<compile_context>
chip_gen: v5e
topology: v5e:2x2
jax: 0.10.0
libtpu: 0.0.40
codegen_flags: <defaults>
</compile_context>

<pallas_src>
import numpy as np
import jax
import jax.numpy as jnp
from jax.experimental import pallas as pl
from jax.experimental.pallas import tpu as pltpu  # noqa: F401  (TPU backend assumed)

BATCH = 4
FEATURE_DIM = 16
HIDDEN_DIM = 32
NUM_NOISE = 20


def _elu(v):
    # F.elu(alpha=1): x if x > 0 else exp(x) - 1 (min() keeps the unselected
    # exp() branch from overflowing for large positive inputs).
    return jnp.where(v > 0.0, v, jnp.exp(jnp.minimum(v, 0.0)) - 1.0)


def _round_up(x, m):
    return ((x + m - 1) // m) * m


def make_params(key, feature_dim=FEATURE_DIM, hidden_dim=HIDDEN_DIM,
                num_noise=NUM_NOISE):
    ks = jax.random.split(key, 13)

    def linear(kw, kb, fan_in, fan_out):
        bound = 1.0 / np.sqrt(fan_in)
        w = jax.random.uniform(kw, (fan_in, fan_out), jnp.float32, -bound, bound)
        b = jax.random.uniform(kb, (1, fan_out), jnp.float32, -bound, bound)
        return w, b

    p = {"noise": jax.random.normal(ks[0], (num_noise, feature_dim), jnp.float32)}
    p["w1"], p["b1"] = linear(ks[1], ks[2], feature_dim, hidden_dim)
    p["w2"], p["b2"] = linear(ks[3], ks[4], hidden_dim, hidden_dim)
    p["w3"], p["b3"] = linear(ks[5], ks[6], hidden_dim, 1)
    p["w4"], p["b4"] = linear(ks[7], ks[8], feature_dim, hidden_dim)
    p["w5"], p["b5"] = linear(ks[9], ks[10], hidden_dim, hidden_dim)
    p["w6"], p["b6"] = linear(ks[11], ks[12], hidden_dim, 1)
    return p


def pack_params(p, batch=BATCH, feature_dim=FEATURE_DIM,
                hidden_dim=HIDDEN_DIM, num_noise=NUM_NOISE):
    """Host-side, one-time packing into two contiguous f32 slabs."""
    d, h, n, b = feature_dim, hidden_dim, num_noise, batch
    h2 = 2 * h
    bn = b * n

    # ---- weight slab (rows, 2H): fused weights + bias rows, 8-row aligned ----
    r_w14 = 0
    r_b14 = _round_up(r_w14 + d, 8)
    r_w25 = _round_up(r_b14 + 1, 8)
    r_b25 = _round_up(r_w25 + h2, 8)
    r_w36 = _round_up(r_b25 + 1, 8)
    r_b36 = _round_up(r_w36 + h2, 8)
    rows_w = _round_up(r_b36 + 1, 8)

    wslab = np.zeros((rows_w, h2), np.float32)
    wslab[r_w14:r_w14 + d, :h] = np.asarray(p["w1"])
    wslab[r_w14:r_w14 + d, h:] = np.asarray(p["w4"])
    wslab[r_b14, :h] = np.asarray(p["b1"])[0]
    wslab[r_b14, h:] = np.asarray(p["b4"])[0]
    wslab[r_w25:r_w25 + h, :h] = np.asarray(p["w2"])            # block-diag l2|l5
    wslab[r_w25 + h:r_w25 + h2, h:] = np.asarray(p["w5"])
    wslab[r_b25, :h] = np.asarray(p["b2"])[0]
    wslab[r_b25, h:] = np.asarray(p["b5"])[0]
    wslab[r_w36:r_w36 + h, 0] = np.asarray(p["w3"])[:, 0]       # lane 0 -> q1
    wslab[r_w36 + h:r_w36 + h2, 1] = np.asarray(p["w6"])[:, 0]  # lane 1 -> q2
    wslab[r_b36, 0] = float(np.asarray(p["b3"])[0, 0])
    wslab[r_b36, 1] = float(np.asarray(p["b6"])[0, 0])

    # ---- constant slab (rows, BN): tiled noise, expansion E, grouped-mean A ----
    r_noise = 0
    r_exp = _round_up(r_noise + bn, 8)
    r_avg = _round_up(r_exp + bn, 8)
    rows_c = _round_up(r_avg + b, 8)

    noise = np.asarray(p["noise"])
    cslab = np.zeros((rows_c, bn), np.float32)
    cslab[r_noise:r_noise + bn, :d] = np.tile(noise, (b, 1))    # row b*N+n = noise[n]
    expand = np.zeros((bn, b), np.float32)
    expand[np.arange(bn), np.arange(bn) // n] = 1.0             # E[b*N+n, b] = 1
    cslab[r_exp:r_exp + bn, :b] = expand
    cslab[r_avg:r_avg + b, :bn] = expand.T / n                  # A[b, b*N+n] = 1/N

    dims = dict(b=b, d=d, h=h, h2=h2, n=n, bn=bn,
                r_w14=r_w14, r_b14=r_b14, r_w25=r_w25, r_b25=r_b25,
                r_w36=r_w36, r_b36=r_b36,
                r_noise=r_noise, r_exp=r_exp, r_avg=r_avg)
    return dict(wslab=jnp.asarray(wslab), cslab=jnp.asarray(cslab), dims=dims)


def make_critic_kernel(dims):
    b, d, h2, bn = dims["b"], dims["d"], dims["h2"], dims["bn"]
    r_w14, r_b14 = dims["r_w14"], dims["r_b14"]
    r_w25, r_b25 = dims["r_w25"], dims["r_b25"]
    r_w36, r_b36 = dims["r_w36"], dims["r_b36"]
    r_noise, r_exp, r_avg = dims["r_noise"], dims["r_exp"], dims["r_avg"]

    def critic_kernel(mean_ref, logstd_ref, cslab_ref, wslab_ref, q_ref):
        # Constant matrices: static, 8-row-aligned, lane-0-aligned slab slices.
        noise_t = cslab_ref[r_noise:r_noise + bn, 0:d]     # (BN, d) tiled noise
        expand = cslab_ref[r_exp:r_exp + bn, 0:b]          # (BN, B) row replication
        avg = cslab_ref[r_avg:r_avg + b, 0:bn]             # (B, BN) grouped mean

        # Fused weights / biases.
        w14 = wslab_ref[r_w14:r_w14 + d, :]                # (d, 2H)   l1|l4
        b14 = wslab_ref[r_b14:r_b14 + 1, :]                # (1, 2H)
        w25 = wslab_ref[r_w25:r_w25 + h2, :]               # (2H, 2H)  block-diag l2|l5
        b25 = wslab_ref[r_b25:r_b25 + 1, :]                # (1, 2H)
        w36 = wslab_ref[r_w36:r_w36 + h2, :]               # (2H, 2H)  cols 0/1 = l3|l6
        b36 = wslab_ref[r_b36:r_b36 + 1, :]                # (1, 2H)

        mean = mean_ref[...]                               # (B, d)
        std = jnp.exp(logstd_ref[...])                     # (B, d)

        # Noise expansion as MXU work (no tile-crossing reshape/repeat):
        #   x[b*N+n, :] = mean[b, :] + std[b, :] * noise[n, :]
        mean_x = jnp.dot(expand, mean, preferred_element_type=jnp.float32)
        std_x = jnp.dot(expand, std, preferred_element_type=jnp.float32)
        x = mean_x + std_x * noise_t                       # (BN, d)

        # Fused l1|l4 + ELU: one (BN, d) @ (d, 2H) matmul for both heads.
        h1 = _elu(jnp.dot(x, w14, preferred_element_type=jnp.float32) + b14)

        # Per-row mean over the N noise samples as a matmul: (B, BN) @ (BN, 2H).
        m = jnp.dot(avg, h1, preferred_element_type=jnp.float32)

        # Fused l2|l5 + ELU, then fused l3|l6.
        g = _elu(jnp.dot(m, w25, preferred_element_type=jnp.float32) + b25)
        q = jnp.dot(g, w36, preferred_element_type=jnp.float32) + b36   # (B, 2H)

        q_ref[...] = q[:, 0:2]                             # lanes 0/1 = q1/q2

    return critic_kernel


def critic_forward(mean, log_std, packed):
    dims = packed["dims"]
    b, d = dims["b"], dims["d"]
    cslab, wslab = packed["cslab"], packed["wslab"]
    kernel = make_critic_kernel(dims)

    full = lambda: (0, 0)   # grid-less: every block is the whole array
    q = pl.pallas_call(
        kernel,
        out_shape=jax.ShapeDtypeStruct((b, 2), jnp.float32),
        in_specs=[
            pl.BlockSpec((b, d), full),            # mean
            pl.BlockSpec((b, d), full),            # log_std
            pl.BlockSpec(cslab.shape, full),       # packed constants (noise/E/A)
            pl.BlockSpec(wslab.shape, full),       # packed weights + biases
        ],
        out_specs=pl.BlockSpec((b, 2), full),
    )(mean, log_std, cslab, wslab)

    return q[:, 0:1], q[:, 1:2]


def critic_reference(mean, log_std, p):
    """NumPy float64 mirror of the PyTorch module (unfused, unpacked weights)."""
    def elu(v):
        return np.where(v > 0.0, v, np.expm1(np.minimum(v, 0.0)))

    mean = np.asarray(mean, np.float64)
    log_std = np.asarray(log_std, np.float64)
    noise = np.asarray(p["noise"], np.float64)
    B, d = mean.shape
    N = noise.shape[0]
    std = np.exp(log_std)
    x = (mean[:, None, :] + std[:, None, :] * noise[None, :, :]).reshape(-1, d)

    def head(wa, ba, wb, bb, wc, bc):
        h = elu(x @ np.asarray(wa, np.float64) + np.asarray(ba, np.float64))
        h = h.reshape(B, N, -1).mean(axis=1)
        h = elu(h @ np.asarray(wb, np.float64) + np.asarray(bb, np.float64))
        return h @ np.asarray(wc, np.float64) + np.asarray(bc, np.float64)

    q1 = head(p["w1"], p["b1"], p["w2"], p["b2"], p["w3"], p["b3"])
    q2 = head(p["w4"], p["b4"], p["w5"], p["b5"], p["w6"], p["b6"])
    return q1, q2


if __name__ == "__main__":
    root = jax.random.PRNGKey(0)
    k_params, k_mean, k_logstd = jax.random.split(root, 3)

    params = make_params(k_params)
    packed = pack_params(params)

    mean = jax.random.normal(k_mean, (BATCH, FEATURE_DIM), jnp.float32)
    log_std = 0.2 * jax.random.normal(k_logstd, (BATCH, FEATURE_DIM), jnp.float32) - 0.5

    q1, q2 = critic_forward(mean, log_std, packed)
    jax.block_until_ready((q1, q2))

    r1, r2 = critic_reference(mean, log_std, params)
    # Tolerance covers the MXU's default matmul precision (f32 operands may be
    # multiplied as bf16) while still catching semantic errors (q is O(0.1-1)).
    np.testing.assert_allclose(np.asarray(q1), r1, rtol=1e-2, atol=1e-2)
    np.testing.assert_allclose(np.asarray(q2), r2, rtol=1e-2, atol=1e-2)
    assert q1.shape == (BATCH, 1) and q2.shape == (BATCH, 1)

    print("KERNEL_OK")
</pallas_src>

<mosaic_0001>
module attributes {stable_mosaic.version = 11 : i64} {
  func.func @critic_kernel(%arg0: memref<4x16xf32, #tpu.memory_space<vmem>>, %arg1: memref<4x16xf32, #tpu.memory_space<vmem>>, %arg2: memref<168x80xf32, #tpu.memory_space<vmem>>, %arg3: memref<168x64xf32, #tpu.memory_space<vmem>>, %arg4: memref<4x2xf32, #tpu.memory_space<vmem>>) attributes {dimension_semantics = [], scalar_prefetch = 0 : i64, scratch_operands = 0 : i64, tpu.core_type = #tpu.core_type<tc>} {
    %c0 = arith.constant 0 : index
    %c0_0 = arith.constant 0 : index
    %0 = vector.load %arg2[%c0, %c0_0] : memref<168x80xf32, #tpu.memory_space<vmem>>, vector<80x16xf32>
    %c80 = arith.constant 80 : index
    %c0_1 = arith.constant 0 : index
    %1 = vector.load %arg2[%c80, %c0_1] : memref<168x80xf32, #tpu.memory_space<vmem>>, vector<80x4xf32>
    %c160 = arith.constant 160 : index
    %c0_2 = arith.constant 0 : index
    %2 = vector.load %arg2[%c160, %c0_2] : memref<168x80xf32, #tpu.memory_space<vmem>>, vector<4x80xf32>
    %c0_3 = arith.constant 0 : index
    %c0_4 = arith.constant 0 : index
    %3 = vector.load %arg3[%c0_3, %c0_4] : memref<168x64xf32, #tpu.memory_space<vmem>>, vector<16x64xf32>
    %c16 = arith.constant 16 : index
    %c0_5 = arith.constant 0 : index
    %4 = vector.load %arg3[%c16, %c0_5] : memref<168x64xf32, #tpu.memory_space<vmem>>, vector<1x64xf32>
    %c24 = arith.constant 24 : index
    %c0_6 = arith.constant 0 : index
    %5 = vector.load %arg3[%c24, %c0_6] : memref<168x64xf32, #tpu.memory_space<vmem>>, vector<64x64xf32>
    %c88 = arith.constant 88 : index
    %c0_7 = arith.constant 0 : index
    %6 = vector.load %arg3[%c88, %c0_7] : memref<168x64xf32, #tpu.memory_space<vmem>>, vector<1x64xf32>
    %c96 = arith.constant 96 : index
    %c0_8 = arith.constant 0 : index
    %7 = vector.load %arg3[%c96, %c0_8] : memref<168x64xf32, #tpu.memory_space<vmem>>, vector<64x64xf32>
    %c160_9 = arith.constant 160 : index
    %c0_10 = arith.constant 0 : index
    %8 = vector.load %arg3[%c160_9, %c0_10] : memref<168x64xf32, #tpu.memory_space<vmem>>, vector<1x64xf32>
    %c0_11 = arith.constant 0 : index
    %c0_12 = arith.constant 0 : index
    %9 = vector.load %arg0[%c0_11, %c0_12] : memref<4x16xf32, #tpu.memory_space<vmem>>, vector<4x16xf32>
    %c0_13 = arith.constant 0 : index
    %c0_14 = arith.constant 0 : index
    %10 = vector.load %arg1[%c0_13, %c0_14] : memref<4x16xf32, #tpu.memory_space<vmem>>, vector<4x16xf32>
    %11 = math.exp %10 : vector<4x16xf32>
    %cst = arith.constant dense<0.000000e+00> : vector<80x16xf32>
    %12 = tpu.matmul %1, %9, %cst {dimension_numbers = #tpu.dot_dimension_numbers<[1], [0], [0], [1], [0, 0, 1, 1], [], []>} : vector<80x4xf32>, vector<4x16xf32>, vector<80x16xf32> -> vector<80x16xf32>
    %cst_15 = arith.constant dense<0.000000e+00> : vector<80x16xf32>
    %13 = tpu.matmul %1, %11, %cst_15 {dimension_numbers = #tpu.dot_dimension_numbers<[1], [0], [0], [1], [0, 0, 1, 1], [], []>} : vector<80x4xf32>, vector<4x16xf32>, vector<80x16xf32> -> vector<80x16xf32>
    %14 = arith.mulf %13, %0 : vector<80x16xf32>
    %15 = arith.addf %12, %14 : vector<80x16xf32>
    %cst_16 = arith.constant dense<0.000000e+00> : vector<80x64xf32>
    %16 = tpu.matmul %15, %3, %cst_16 {dimension_numbers = #tpu.dot_dimension_numbers<[1], [0], [0], [1], [0, 0, 1, 1], [], []>} : vector<80x16xf32>, vector<16x64xf32>, vector<80x64xf32> -> vector<80x64xf32>
    %17 = vector.broadcast %4 : vector<1x64xf32> to vector<80x64xf32>
    %18 = arith.addf %16, %17 : vector<80x64xf32>
    %cst_17 = arith.constant 0.000000e+00 : f32
    %19 = vector.broadcast %cst_17 : f32 to vector<80x64xf32>
    %20 = arith.cmpf ogt, %18, %19 : vector<80x64xf32>
    %cst_18 = arith.constant 0.000000e+00 : f32
    %21 = vector.broadcast %cst_18 : f32 to vector<80x64xf32>
    %22 = arith.minimumf %18, %21 : vector<80x64xf32>
    %23 = math.exp %22 : vector<80x64xf32>
    %cst_19 = arith.constant 1.000000e+00 : f32
    %24 = vector.broadcast %cst_19 : f32 to vector<80x64xf32>
    %25 = arith.subf %23, %24 : vector<80x64xf32>
    %26 = arith.select %20, %18, %25 : vector<80x64xi1>, vector<80x64xf32>
    %cst_20 = arith.constant dense<0.000000e+00> : vector<4x64xf32>
    %27 = tpu.matmul %2, %26, %cst_20 {dimension_numbers = #tpu.dot_dimension_numbers<[1], [0], [0], [1], [0, 0, 1, 1], [], []>} : vector<4x80xf32>, vector<80x64xf32>, vector<4x64xf32> -> vector<4x64xf32>
    %cst_21 = arith.constant dense<0.000000e+00> : vector<4x64xf32>
    %28 = tpu.matmul %27, %5, %cst_21 {dimension_numbers = #tpu.dot_dimension_numbers<[1], [0], [0], [1], [0, 0, 1, 1], [], []>} : vector<4x64xf32>, vector<64x64xf32>, vector<4x64xf32> -> vector<4x64xf32>
    %29 = vector.broadcast %6 : vector<1x64xf32> to vector<4x64xf32>
    %30 = arith.addf %28, %29 : vector<4x64xf32>
    %cst_22 = arith.constant 0.000000e+00 : f32
    %31 = vector.broadcast %cst_22 : f32 to vector<4x64xf32>
    %32 = arith.cmpf ogt, %30, %31 : vector<4x64xf32>
    %cst_23 = arith.constant 0.000000e+00 : f32
    %33 = vector.broadcast %cst_23 : f32 to vector<4x64xf32>
    %34 = arith.minimumf %30, %33 : vector<4x64xf32>
    %35 = math.exp %34 : vector<4x64xf32>
    %cst_24 = arith.constant 1.000000e+00 : f32
    %36 = vector.broadcast %cst_24 : f32 to vector<4x64xf32>
    %37 = arith.subf %35, %36 : vector<4x64xf32>
    %38 = arith.select %32, %30, %37 : vector<4x64xi1>, vector<4x64xf32>
    %cst_25 = arith.constant dense<0.000000e+00> : vector<4x64xf32>
    %39 = tpu.matmul %38, %7, %cst_25 {dimension_numbers = #tpu.dot_dimension_numbers<[1], [0], [0], [1], [0, 0, 1, 1], [], []>} : vector<4x64xf32>, vector<64x64xf32>, vector<4x64xf32> -> vector<4x64xf32>
    %40 = vector.broadcast %8 : vector<1x64xf32> to vector<4x64xf32>
    %41 = arith.addf %39, %40 : vector<4x64xf32>
    %42 = vector.extract_strided_slice %41 {offsets = [0, 0], sizes = [4, 2], strides = [1, 1]} : vector<4x64xf32> to vector<4x2xf32>
    %c0_26 = arith.constant 0 : index
    %c0_27 = arith.constant 0 : index
    %43 = vector.load %arg4[%c0_26, %c0_27] : memref<4x2xf32, #tpu.memory_space<vmem>>, vector<4x2xf32>
    tpu.vector_store %arg4[%c0_26, %c0_27], %42 {strides = array<i32>} : memref<4x2xf32, #tpu.memory_space<vmem>>, vector<4x2xf32>,
    return
  }
}

</mosaic_0001>

<llo_original>
// kernel: tpu_custom_call.1
$region0: #{tpu_custom_call.1}
  #allocation0 [shape = 'u32[]', space=smem, size = 0x4, offset = 0x4, fixed_abs, tag = 'smem constant byte address 0x4 - core index']
  #allocation1 [shape = 'u32[72,128]{1,0:T(1,128)}', space=vmem, size = 0x9000, scoped, tag = 'internal scratch']
  %s0 = inlined_call_operand.vmem [shape: f32[4,16], index: 0, kind: input, shape index: {}]
  %s1 = inlined_call_operand.vmem [shape: f32[4,16], index: 1, kind: input, shape index: {}]
  %s2 = inlined_call_operand.vmem [shape: f32[168,80], index: 2, kind: input, shape index: {}]
  %s3 = inlined_call_operand.vmem [shape: f32[168,64], index: 3, kind: input, shape index: {}]
  %s4 = inlined_call_operand.vmem [shape: f32[4,2], index: 4, kind: output, shape index: {}]
  %s5 = sld [smem:[#allocation0]]
  $region26: #{tpu_custom_call.1} parent=0
    _
  %s7 = ssub.s32 1, %s5
  %s8 = scalar_select 0, %s7, %s5
  // Predicated region
  $region2: #{tpu_custom_call.1} parent=0 // pred_check
    _
  $region3: #{tpu_custom_call.1} parent=0 // pred_check_branch
    %10 = sbr.rel (0) target = $region5
  $region4: #{tpu_custom_call.1} parent=0 // pred_region
    _
  $region5: #{tpu_custom_call.1} parent=0 // pred_fallthru
    _
  // Predicated region
  $region6: #{tpu_custom_call.1} parent=0 // pred_check
    _
  $region7: #{tpu_custom_call.1} parent=0 // pred_check_branch
    %12 = sbr.rel (0) target = $region9
  $region8: #{tpu_custom_call.1} parent=0 // pred_region
    _
  $region9: #{tpu_custom_call.1} parent=0 // pred_fallthru
    _
  // Predicated region
  $region10: #{tpu_custom_call.1} parent=0 // pred_check
    _
  $region11: #{tpu_custom_call.1} parent=0 // pred_check_branch
    %14 = sbr.rel (0) target = $region13
  $region12: #{tpu_custom_call.1} parent=0 // pred_region
    _
  $region13: #{tpu_custom_call.1} parent=0 // pred_fallthru
    _
  // Predicated region
  $region14: #{tpu_custom_call.1} parent=0 // pred_check
    _
  $region15: #{tpu_custom_call.1} parent=0 // pred_check_branch
    %16 = sbr.rel (0) target = $region17
  $region16: #{tpu_custom_call.1} parent=0 // pred_region
    _
  $region17: #{tpu_custom_call.1} parent=0 // pred_fallthru
    _
  %v17 = vld [vmem:[%s2] sm:$0xff]
  %v18 = vld [vmem:[%s2 + $0x8] sm:$0xff]
  %v19 = vld [vmem:[%s2 + $0x10] sm:$0xff]
  %v20 = vld [vmem:[%s2 + $0x18] sm:$0xff]
  %v21 = vld [vmem:[%s2 + $0x20] sm:$0xff]
  %v22 = vld [vmem:[%s2 + $0x28] sm:$0xff]
  %v23 = vld [vmem:[%s2 + $0x30] sm:$0xff]
  %v24 = vld [vmem:[%s2 + $0x38] sm:$0xff]
  %v25 = vld [vmem:[%s2 + $0x40] sm:$0xff]
  %v26 = vld [vmem:[%s2 + $0x48] sm:$0xff]
  %v27 = vld [vmem:[%s2 + $0x50] sm:$0xff]
  %v28 = vld [vmem:[%s2 + $0x58] sm:$0xff]
  %v29 = vld [vmem:[%s2 + $0x60] sm:$0xff]
  %v30 = vld [vmem:[%s2 + $0x68] sm:$0xff]
  %v31 = vld [vmem:[%s2 + $0x70] sm:$0xff]
  %v32 = vld [vmem:[%s2 + $0x78] sm:$0xff]
  %v33 = vld [vmem:[%s2 + $0x80] sm:$0xff]
  %v34 = vld [vmem:[%s2 + $0x88] sm:$0xff]
  %v35 = vld [vmem:[%s2 + $0x90] sm:$0xff]
  %v36 = vld [vmem:[%s2 + $0x98] sm:$0xff]
  %v37 = vld [vmem:[%s2 + $0xa0] sm:$0xf]
  %v38 = vld [vmem:[%s3] sm:$0xff]
  %v39 = vld [vmem:[%s3 + $0x8] sm:$0xff]
  %v40 = vld [vmem:[%s3 + $0x10] sm:$0x1]
  %v41 = vld [vmem:[%s3 + $0x18] sm:$0xff]
  %v42 = vld [vmem:[%s3 + $0x20] sm:$0xff]
  %v43 = vld [vmem:[%s3 + $0x28] sm:$0xff]
  %v44 = vld [vmem:[%s3 + $0x30] sm:$0xff]
  %v45 = vld [vmem:[%s3 + $0x38] sm:$0xff]
  %v46 = vld [vmem:[%s3 + $0x40] sm:$0xff]
  %v47 = vld [vmem:[%s3 + $0x48] sm:$0xff]
  %v48 = vld [vmem:[%s3 + $0x50] sm:$0xff]
  %v49 = vld [vmem:[%s3 + $0x58] sm:$0x1]
  %v50 = vld [vmem:[%s3 + $0x60] sm:$0xff]
  %v51 = vld [vmem:[%s3 + $0x68] sm:$0xff]
  %v52 = vld [vmem:[%s3 + $0x70] sm:$0xff]
  %v53 = vld [vmem:[%s3 + $0x78] sm:$0xff]
  %v54 = vld [vmem:[%s3 + $0x80] sm:$0xff]
  %v55 = vld [vmem:[%s3 + $0x88] sm:$0xff]
  %v56 = vld [vmem:[%s3 + $0x90] sm:$0xff]
  %v57 = vld [vmem:[%s3 + $0x98] sm:$0xff]
  %v58 = vld [vmem:[%s3 + $0xa0] sm:$0x1]
  %v59 = vld [vmem:[%s0] sm:$0xf]
  %v60 = vld [vmem:[%s1] sm:$0xf]
  %v61 = vmul.f32 %v60, 1.442695
  %v62 = vpow.pop %v61
  %vm63 = vcmask 31744
  %v65 = vsel %vm63, %v27, 0
  %v68 = vsel %vm63, %v28, 0
  %v71 = vsel %vm63, %v29, 0
  %v74 = vsel %vm63, %v30, 0
  %v77 = vsel %vm63, %v31, 0
  %v80 = vsel %vm63, %v32, 0
  %v83 = vsel %vm63, %v33, 0
  %v86 = vsel %vm63, %v34, 0
  %v89 = vsel %vm63, %v35, 0
  %v92 = vsel %vm63, %v36, 0
  %vm94 = vcmask 1043456
  %v96 = vsel %vm94, %v62, 0
  %98 = vmatpush.msra.mxu0 0.0
  %99 = vmatpush.msra.mxu0 0.0
  %100 = vmatpush.msra.mxu0 0.0
  %101 = vmatpush.msra.mxu0 0.0
  %102 = vmatpush.msra.mxu0 0.0
  %103 = vmatpush.msra.mxu0 0.0
  %104 = vmatpush.msra.mxu0 0.0
  %105 = vmatpush.msra.mxu0 0.0
  %106 = vmatpush.msra.mxu0 0.0
  %107 = vmatpush.msra.mxu0 0.0
  %108 = vmatpush.msra.mxu0 0.0
  %109 = vmatpush.msra.mxu0 0.0
  %110 = vmatpush.msra.mxu0 0.0
  %111 = vmatpush.msra.mxu0 0.0
  %112 = vmatpush.msra.mxu0 0.0
  %113 = vmatpush.msra.mxu0 %v96
  %114 = vmatmul.f32.gmra.mxu0 %v65
  %v115 = vpop.f32.mrf.mxu0
  %v116 = vadd.f32 0.0, %v115
  %117 = vmatmul.f32.gmra.mxu0 %v68
  %v118 = vpop.f32.mrf.mxu0
  %v119 = vadd.f32 0.0, %v118
  %120 = vmatmul.f32.gmra.mxu0 %v71
  %v121 = vpop.f32.mrf.mxu0
  %v122 = vadd.f32 0.0, %v121
  %123 = vmatmul.f32.gmra.mxu0 %v74
  %v124 = vpop.f32.mrf.mxu0
  %v125 = vadd.f32 0.0, %v124
  %126 = vmatmul.f32.gmra.mxu0 %v77
  %v127 = vpop.f32.mrf.mxu0
  %v128 = vadd.f32 0.0, %v127
  %129 = vmatmul.f32.gmra.mxu0 %v80
  %v130 = vpop.f32.mrf.mxu0
  %v131 = vadd.f32 0.0, %v130
  %132 = vmatmul.f32.gmra.mxu0 %v83
  %v133 = vpop.f32.mrf.mxu0
  %v134 = vadd.f32 0.0, %v133
  %135 = vmatmul.f32.gmra.mxu0 %v86
  %v136 = vpop.f32.mrf.mxu0
  %v137 = vadd.f32 0.0, %v136
  %138 = vmatmul.f32.gmra.mxu0 %v89
  %v139 = vpop.f32.mrf.mxu0
  %v140 = vadd.f32 0.0, %v139
  %141 = vmatmul.f32.gmra.mxu0 %v92
  %v142 = vpop.f32.mrf.mxu0
  %v143 = vadd.f32 0.0, %v142
  %144 = vdwg.mxu0
  %v145 = vmul.f32 %v116, %v17
  %v146 = vmul.f32 %v119, %v18
  %v147 = vmul.f32 %v122, %v19
  %v148 = vmul.f32 %v125, %v20
  %v149 = vmul.f32 %v128, %v21
  %v150 = vmul.f32 %v131, %v22
  %v151 = vmul.f32 %v134, %v23
  %v152 = vmul.f32 %v137, %v24
  %v153 = vmul.f32 %v140, %v25
  %v154 = vmul.f32 %v143, %v26
  %v156 = vsel %vm94, %v59, 0
  %158 = vmatpush.msra.mxu0 0.0
  %159 = vmatpush.msra.mxu0 0.0
  %160 = vmatpush.msra.mxu0 0.0
  %161 = vmatpush.msra.mxu0 0.0
  %162 = vmatpush.msra.mxu0 0.0
  %163 = vmatpush.msra.mxu0 0.0
  %164 = vmatpush.msra.mxu0 0.0
  %165 = vmatpush.msra.mxu0 0.0
  %166 = vmatpush.msra.mxu0 0.0
  %167 = vmatpush.msra.mxu0 0.0
  %168 = vmatpush.msra.mxu0 0.0
  %169 = vmatpush.msra.mxu0 0.0
  %170 = vmatpush.msra.mxu0 0.0
  %171 = vmatpush.msra.mxu0 0.0
  %172 = vmatpush.msra.mxu0 0.0
  %173 = vmatpush.msra.mxu0 %v156
  %174 = vmatmul.f32.gmra.mxu0 %v65
  %v175 = vpop.f32.mrf.mxu0
  %v176 = vadd.f32 %v145, %v175
  %177 = vmatmul.f32.gmra.mxu0 %v68
  %v178 = vpop.f32.mrf.mxu0
  %v179 = vadd.f32 %v146, %v178
  %180 = vmatmul.f32.gmra.mxu0 %v71
  %v181 = vpop.f32.mrf.mxu0
  %v182 = vadd.f32 %v147, %v181
  %183 = vmatmul.f32.gmra.mxu0 %v74
  %v184 = vpop.f32.mrf.mxu0
  %v185 = vadd.f32 %v148, %v184
  %186 = vmatmul.f32.gmra.mxu0 %v77
  %v187 = vpop.f32.mrf.mxu0
  %v188 = vadd.f32 %v149, %v187
  %189 = vmatmul.f32.gmra.mxu0 %v80
  %v190 = vpop.f32.mrf.mxu0
  %v191 = vadd.f32 %v150, %v190
  %192 = vmatmul.f32.gmra.mxu0 %v83
  %v193 = vpop.f32.mrf.mxu0
  %v194 = vadd.f32 %v151, %v193
  %195 = vmatmul.f32.gmra.mxu0 %v86
  %v196 = vpop.f32.mrf.mxu0
  %v197 = vadd.f32 %v152, %v196
  %198 = vmatmul.f32.gmra.mxu0 %v89
  %v199 = vpop.f32.mrf.mxu0
  %v200 = vadd.f32 %v153, %v199
  %201 = vmatmul.f32.gmra.mxu0 %v92
  %v202 = vpop.f32.mrf.mxu0
  %v203 = vadd.f32 %v154, %v202
  %204 = vdwg.mxu0
  %v205 = vperm.slane %v40, 0
  %vm206 = vcmask 130048
  %v208 = vsel %vm206, %v176, 0
  %v211 = vsel %vm206, %v179, 0
  %v214 = vsel %vm206, %v182, 0
  %v217 = vsel %vm206, %v185, 0
  %v220 = vsel %vm206, %v188, 0
  %v223 = vsel %vm206, %v191, 0
  %v226 = vsel %vm206, %v194, 0
  %v229 = vsel %vm206, %v197, 0
  %v232 = vsel %vm206, %v200, 0
  %v235 = vsel %vm206, %v203, 0
  %237 = vmatpush.msra.mxu0 0.0
  %238 = vmatpush.msra.mxu0 0.0
  %239 = vmatpush.msra.mxu0 0.0
  %240 = vmatpush.msra.mxu0 0.0
  %241 = vmatpush.msra.mxu0 0.0
  %242 = vmatpush.msra.mxu0 0.0
  %243 = vmatpush.msra.mxu0 0.0
  %244 = vmatpush.msra.mxu0 0.0
  %245 = vmatpush.msra.mxu0 0.0
  %246 = vmatpush.msra.mxu0 0.0
  %247 = vmatpush.msra.mxu0 0.0
  %248 = vmatpush.msra.mxu0 0.0
  %249 = vmatpush.msra.mxu0 0.0
  %250 = vmatpush.msra.mxu0 0.0
  %251 = vmatpush.msra.mxu0 %v39
  %252 = vmatpush.msra.mxu0 %v38
  %253 = vmatmul.f32.gmra.mxu0 %v208
  %v254 = vpop.f32.mrf.mxu0
  %v255 = vadd.f32 %v205, %v254
  %256 = vmatmul.f32.gmra.mxu0 %v211
  %v257 = vpop.f32.mrf.mxu0
  %v258 = vadd.f32 %v205, %v257
  %259 = vmatmul.f32.gmra.mxu0 %v214
  %v260 = vpop.f32.mrf.mxu0
  %v261 = vadd.f32 %v205, %v260
  %262 = vmatmul.f32.gmra.mxu0 %v217
  %v263 = vpop.f32.mrf.mxu0
  %v264 = vadd.f32 %v205, %v263
  %265 = vmatmul.f32.gmra.mxu0 %v220
  %v266 = vpop.f32.mrf.mxu0
  %v267 = vadd.f32 %v205, %v266
  %268 = vmatmul.f32.gmra.mxu0 %v223
  %v269 = vpop.f32.mrf.mxu0
  %v270 = vadd.f32 %v205, %v269
  %271 = vmatmul.f32.gmra.mxu0 %v226
  %v272 = vpop.f32.mrf.mxu0
  %v273 = vadd.f32 %v205, %v272
  %274 = vmatmul.f32.gmra.mxu0 %v229
  %v275 = vpop.f32.mrf.mxu0
  %v276 = vadd.f32 %v205, %v275
  %277 = vmatmul.f32.gmra.mxu0 %v232
  %v278 = vpop.f32.mrf.mxu0
  %v279 = vadd.f32 %v205, %v278
  %280 = vmatmul.f32.gmra.mxu0 %v235
  %v281 = vpop.f32.mrf.mxu0
  %v282 = vadd.f32 %v205, %v281
  %283 = vdwg.mxu0
  %vm284 = vcmp.gt.f32.partialorder %v255, 0.0
  %vm285 = vcmp.gt.f32.partialorder %v258, 0.0
  %vm286 = vcmp.gt.f32.partialorder %v261, 0.0
  %vm287 = vcmp.gt.f32.partialorder %v264, 0.0
  %vm288 = vcmp.gt.f32.partialorder %v267, 0.0
  %vm289 = vcmp.gt.f32.partialorder %v270, 0.0
  %vm290 = vcmp.gt.f32.partialorder %v273, 0.0
  %vm291 = vcmp.gt.f32.partialorder %v276, 0.0
  %vm292 = vcmp.gt.f32.partialorder %v279, 0.0
  %vm293 = vcmp.gt.f32.partialorder %v282, 0.0
  %v294 = vmin.f32 %v255, 0.0
  %v295 = vmin.f32 %v258, 0.0
  %v296 = vmin.f32 %v261, 0.0
  %v297 = vmin.f32 %v264, 0.0
  %v298 = vmin.f32 %v267, 0.0
  %v299 = vmin.f32 %v270, 0.0
  %v300 = vmin.f32 %v273, 0.0
  %v301 = vmin.f32 %v276, 0.0
  %v302 = vmin.f32 %v279, 0.0
  %v303 = vmin.f32 %v282, 0.0
  %v304 = vmul.f32 %v294, 1.442695
  %v305 = vpow.pop %v304
  %v306 = vmul.f32 %v295, 1.442695
  %v307 = vpow.pop %v306
  %v308 = vmul.f32 %v296, 1.442695
  %v309 = vpow.pop %v308
  %v310 = vmul.f32 %v297, 1.442695
  %v311 = vpow.pop %v310
  %v312 = vmul.f32 %v298, 1.442695
  %v313 = vpow.pop %v312
  %v314 = vmul.f32 %v299, 1.442695
  %v315 = vpow.pop %v314
  %v316 = vmul.f32 %v300, 1.442695
  %v317 = vpow.pop %v316
  %v318 = vmul.f32 %v301, 1.442695
  %v319 = vpow.pop %v318
  %v320 = vmul.f32 %v302, 1.442695
  %v321 = vpow.pop %v320
  %v322 = vmul.f32 %v303, 1.442695
  %v323 = vpow.pop %v322
  %v324 = vsub.f32 %v305, 1.0
  %v325 = vsub.f32 %v307, 1.0
  %v326 = vsub.f32 %v309, 1.0
  %v327 = vsub.f32 %v311, 1.0
  %v328 = vsub.f32 %v313, 1.0
  %v329 = vsub.f32 %v315, 1.0
  %v330 = vsub.f32 %v317, 1.0
  %v331 = vsub.f32 %v319, 1.0
  %v332 = vsub.f32 %v321, 1.0
  %v333 = vsub.f32 %v323, 1.0
  %v334 = vsel %vm284, %v255, %v324
  %v335 = vsel %vm285, %v258, %v325
  %v336 = vsel %vm286, %v261, %v326
  %v337 = vsel %vm287, %v264, %v327
  %v338 = vsel %vm288, %v267, %v328
  %v339 = vsel %vm289, %v270, %v329
  %v340 = vsel %vm290, %v273, %v330
  %v341 = vsel %vm291, %v276, %v331
  %v342 = vsel %vm292, %v279, %v332
  %v343 = vsel %vm293, %v282, %v333
  %vm344 = vcmask 654336
  %v346 = vsel %vm344, %v37, 0
  %348 = vmatpush.msra.mxu0 0.0
  %349 = vmatpush.msra.mxu0 0.0
  %350 = vmatpush.msra.mxu0 0.0
  %351 = vmatpush.msra.mxu0 0.0
  %352 = vmatpush.msra.mxu0 0.0
  %353 = vmatpush.msra.mxu0 0.0
  %354 = vmatpush.msra.mxu0 %v343
  %355 = vmatpush.msra.mxu0 %v342
  %356 = vmatpush.msra.mxu0 %v341
  %357 = vmatpush.msra.mxu0 %v340
  %358 = vmatpush.msra.mxu0 %v339
  %359 = vmatpush.msra.mxu0 %v338
  %360 = vmatpush.msra.mxu0 %v337
  %361 = vmatpush.msra.mxu0 %v336
  %362 = vmatpush.msra.mxu0 %v335
  %363 = vmatpush.msra.mxu0 %v334
  %364 = vmatmul.f32.gmra.mxu0 %v346
  %v365 = vpop.f32.mrf.mxu0
  %v366 = vadd.f32 0.0, %v365
  %367 = vdwg.mxu0
  %v368 = vperm.slane %v49, 0
  %vm369 = vcmask 523264
  %v371 = vsel %vm369, %v366, 0
  %373 = vmatpush.msra.mxu0 0.0
  %374 = vmatpush.msra.mxu0 0.0
  %375 = vmatpush.msra.mxu0 0.0
  %376 = vmatpush.msra.mxu0 0.0
  %377 = vmatpush.msra.mxu0 0.0
  %378 = vmatpush.msra.mxu0 0.0
  %379 = vmatpush.msra.mxu0 0.0
  %380 = vmatpush.msra.mxu0 0.0
  %381 = vmatpush.msra.mxu0 %v48
  %382 = vmatpush.msra.mxu0 %v47
  %383 = vmatpush.msra.mxu0 %v46
  %384 = vmatpush.msra.mxu0 %v45
  %385 = vmatpush.msra.mxu0 %v44
  %386 = vmatpush.msra.mxu0 %v43
  %387 = vmatpush.msra.mxu0 %v42
  %388 = vmatpush.msra.mxu0 %v41
  %389 = vmatmul.f32.gmra.mxu0 %v371
  %v390 = vpop.f32.mrf.mxu0
  %v391 = vadd.f32 %v368, %v390
  %392 = vdwg.mxu0
  %vm393 = vcmp.gt.f32.partialorder %v391, 0.0
  %v394 = vmin.f32 %v391, 0.0
  %v395 = vmul.f32 %v394, 1.442695
  %v396 = vpow.pop %v395
  %v397 = vsub.f32 %v396, 1.0
  %v398 = vsel %vm393, %v391, %v397
  %v399 = vperm.slane %v58, 0
  %v401 = vsel %vm369, %v398, 0
  %403 = vmatpush.msra.mxu0 0.0
  %404 = vmatpush.msra.mxu0 0.0
  %405 = vmatpush.msra.mxu0 0.0
  %406 = vmatpush.msra.mxu0 0.0
  %407 = vmatpush.msra.mxu0 0.0
  %408 = vmatpush.msra.mxu0 0.0
  %409 = vmatpush.msra.mxu0 0.0
  %410 = vmatpush.msra.mxu0 0.0
  %411 = vmatpush.msra.mxu0 %v57
  %412 = vmatpush.msra.mxu0 %v56
  %413 = vmatpush.msra.mxu0 %v55
  %414 = vmatpush.msra.mxu0 %v54
  %415 = vmatpush.msra.mxu0 %v53
  %416 = vmatpush.msra.mxu0 %v52
  %417 = vmatpush.msra.mxu0 %v51
  %418 = vmatpush.msra.mxu0 %v50
  %419 = vmatmul.f32.gmra.mxu0 %v401
  %v420 = vpop.f32.mrf.mxu0
  %v421 = vadd.f32 %v399, %v420
  %422 = vdwg.mxu0
  %vm423 = vcmask 11264
  %424 = vst.msk [vmem:[%s4] sm:$0xf] %vm423, %v421
  // Predicated region
  $region18: #{tpu_custom_call.1} parent=0 // pred_check
    _
  $region19: #{tpu_custom_call.1} parent=0 // pred_check_branch
    %426 = sbr.rel (0) target = $region21
  $region20: #{tpu_custom_call.1} parent=0 // pred_region
    _
  $region21: #{tpu_custom_call.1} parent=0 // pred_fallthru
    _
  // Predicated region
  $region22: #{tpu_custom_call.1} parent=0 // pred_check
    _
  $region23: #{tpu_custom_call.1} parent=0 // pred_check_branch
    %428 = sbr.rel (0) target = $region25
  $region24: #{tpu_custom_call.1} parent=0 // pred_region
    _
  $region25: #{tpu_custom_call.1} parent=0 // pred_fallthru
    _

</llo_original>
